<compile_context>
chip_gen: v5e
topology: v5e:2x2
jax: 0.10.0
libtpu: 0.0.40
codegen_flags: <defaults>
</compile_context>

<pallas_src>
import functools

import jax
import jax.numpy as jnp
from jax.experimental import pallas as pl
from jax.experimental.pallas import tpu as pltpu

_LANE = 128
_BN_EPS = 1e-5


def _round_up(x, m):
    return (x + m - 1) // m * m


def _mlp_kernel(x_ref, w1t_ref, w2t_ref, gamma_ref, beta_ref, o_ref, acc_ref,
                *, use_bn, inv_n):
    k = pl.program_id(1)                      # H-tile (reduction) index

    @pl.when(k == 0)
    def _init():
        acc_ref[...] = jnp.zeros_like(acc_ref)

    # ---- matmul 1 on the MXU: bf16 operands, f32 accumulation -> (N, tH) f32
    h = jnp.dot(x_ref[...], w1t_ref[...], preferred_element_type=jnp.float32)

    if use_bn:  # static: batch size known at trace time (mirrors h.shape[0] == 1)
        # One-pass biased batch statistics per feature column (f32 on VPU/XLU).
        s1 = jnp.sum(h, axis=0, keepdims=True)
        s2 = jnp.sum(h * h, axis=0, keepdims=True)
        mean = s1 * inv_n
        var = jnp.maximum(s2 * inv_n - mean * mean, 0.0)
        h = (h - mean) * jax.lax.rsqrt(var + _BN_EPS)
        h = h * gamma_ref[...] + beta_ref[...]

    h = jnp.maximum(h, 0.0)                   # ReLU in f32

    # ---- matmul 2 on the MXU: accumulate this H slab into the f32 scratch
    acc_ref[...] += jnp.dot(h.astype(jnp.bfloat16), w2t_ref[...],
                            preferred_element_type=jnp.float32)

    @pl.when(k == pl.num_programs(1) - 1)
    def _finalize():
        o_ref[...] = acc_ref[...].astype(o_ref.dtype)


def prepare_params(w1, w2, gamma, beta, *, t_h=_LANE, t_out=_LANE):
    """One-time relayout of PyTorch-layout parameters.

    w1: (H, Din), w2: (Dout, H) -- nn.Linear weight layout.
    Transposes to (in, out), zero-pads features to lane-dense multiples of 128
    and casts the matmul operands to bf16, so the per-call wrapper never pays
    a weight relayout or cast.
    """
    h_dim, din = w1.shape
    dout = w2.shape[0]
    din_p = _round_up(din, _LANE)
    h_p = _round_up(h_dim, t_h)
    dout_p = _round_up(dout, t_out)

    w1t = jnp.zeros((din_p, h_p), jnp.bfloat16)
    w1t = w1t.at[:din, :h_dim].set(w1.T.astype(jnp.bfloat16))
    w2t = jnp.zeros((h_p, dout_p), jnp.bfloat16)
    w2t = w2t.at[:h_dim, :dout].set(w2.T.astype(jnp.bfloat16))
    gamma_p = jnp.ones((1, h_p), jnp.float32).at[0, :h_dim].set(
        gamma.astype(jnp.float32))
    beta_p = jnp.zeros((1, h_p), jnp.float32).at[0, :h_dim].set(
        beta.astype(jnp.float32))

    return {
        "w1t": w1t, "w2t": w2t, "gamma": gamma_p, "beta": beta_p,
        "dims": (din, h_dim, dout), "padded": (din_p, h_p, dout_p),
        "tiles": (t_h, t_out),
    }


def _vmem_limit_bytes(n, din_p, t_h, t_out):
    bf16, f32 = 2, 4
    need = (2 * n * din_p * bf16          # x (pipeline double-buffer)
            + 2 * din_p * t_h * bf16      # w1t H-slab
            + 2 * t_h * t_out * bf16      # w2t tile
            + 2 * 2 * t_h * f32           # gamma + beta tiles
            + 2 * n * t_out * f32         # output tile
            + n * t_out * f32)            # f32 accumulator scratch
    return min(2 * need + (4 << 20), 64 << 20)


def mlp_forward(x, params):
    """x: (N, Din). Returns (N, Dout) f32."""
    n, din = x.shape
    din_d, h_dim, dout = params["dims"]
    assert din == din_d, "input feature dim mismatch"
    din_p, h_p, dout_p = params["padded"]
    t_h, t_out = params["tiles"]

    # Pad features with zeros (exact for the matmul) and feed the MXU bf16.
    x_p = jnp.zeros((n, din_p), jnp.bfloat16).at[:, :din].set(
        x.astype(jnp.bfloat16))

    use_bn = n != 1                        # replicates `if h.shape[0] == 1`
    grid = (dout_p // t_out, h_p // t_h)   # (parallel Dout tiles, reduction H tiles)

    kernel = functools.partial(_mlp_kernel, use_bn=use_bn, inv_n=1.0 / n)

    out_p = pl.pallas_call(
        kernel,
        out_shape=jax.ShapeDtypeStruct((n, dout_p), jnp.float32),
        grid_spec=pltpu.PrefetchScalarGridSpec(
            num_scalar_prefetch=0,
            grid=grid,
            in_specs=[
                pl.BlockSpec((n, din_p), lambda j, k: (0, 0)),     # x (resident)
                pl.BlockSpec((din_p, t_h), lambda j, k: (0, k)),   # w1t H-slab
                pl.BlockSpec((t_h, t_out), lambda j, k: (k, j)),   # w2t tile
                pl.BlockSpec((1, t_h), lambda j, k: (0, k)),       # gamma
                pl.BlockSpec((1, t_h), lambda j, k: (0, k)),       # beta
            ],
            out_specs=pl.BlockSpec((n, t_out), lambda j, k: (0, j)),
            scratch_shapes=[pltpu.VMEM((n, t_out), jnp.float32)],
        ),
        compiler_params=pltpu.CompilerParams(
            dimension_semantics=("parallel", "arbitrary"),
            vmem_limit_bytes=_vmem_limit_bytes(n, din_p, t_h, t_out)),
        cost_estimate=pl.CostEstimate(
            flops=2 * n * (din_p * h_p + h_p * dout_p),
            transcendentals=0,
            bytes_accessed=(n * din_p * 2 + din_p * h_p * 2
                            + h_p * dout_p * 2 + n * dout_p * 4)),
    )(x_p, params["w1t"], params["w2t"], params["gamma"], params["beta"])

    return out_p[:, :dout]


def mlp_reference(x, w1, w2, gamma, beta):
    """Pure-JAX reference mirroring the kernel precision (bf16 MXU operands,
    f32 accumulation/elementwise), straight from the PyTorch forward."""
    n = x.shape[0]
    h = jnp.dot(x.astype(jnp.bfloat16), w1.T.astype(jnp.bfloat16),
                preferred_element_type=jnp.float32)
    if n != 1:
        mean = h.mean(axis=0, keepdims=True)
        var = ((h - mean) ** 2).mean(axis=0, keepdims=True)   # biased
        h = (h - mean) * jax.lax.rsqrt(var + _BN_EPS) * gamma + beta
    h = jnp.maximum(h, 0.0)
    return jnp.dot(h.astype(jnp.bfloat16), w2.T.astype(jnp.bfloat16),
                   preferred_element_type=jnp.float32)


def xavier_uniform(key, out_features, in_features):
    # torch.nn.init.xavier_uniform_ on an (out, in) nn.Linear weight
    bound = (6.0 / (in_features + out_features)) ** 0.5
    return jax.random.uniform(key, (out_features, in_features),
                              minval=-bound, maxval=bound, dtype=jnp.float32)


def _run_case(key, batch, input_dim, hidden_dim, output_dim):
    kx, k1, k2 = jax.random.split(key, 3)
    x = jax.random.normal(kx, (batch, input_dim), dtype=jnp.float32)
    w1 = xavier_uniform(k1, hidden_dim, input_dim)   # mlp_layer1.weight (H, Din)
    w2 = xavier_uniform(k2, output_dim, hidden_dim)  # mlp_layer2.weight (Dout, H)
    gamma = jnp.ones((hidden_dim,), jnp.float32)     # BatchNorm1d.weight init
    beta = jnp.zeros((hidden_dim,), jnp.float32)     # BatchNorm1d.bias init

    params = prepare_params(w1, w2, gamma, beta)     # one-time relayout
    out = mlp_forward(x, params)
    jax.block_until_ready(out)

    ref = mlp_reference(x, w1, w2, gamma, beta)
    assert out.shape == (batch, output_dim)
    assert jnp.allclose(out, ref, atol=5e-3, rtol=5e-3), (
        f"mismatch vs reference for batch={batch}, "
        f"dims=({input_dim},{hidden_dim},{output_dim})")


if __name__ == "__main__":
    key = jax.random.PRNGKey(0)
    k_a, k_b, k_c = jax.random.split(key, 3)

    # Small shapes consistent with the module's forward.
    _run_case(k_a, batch=8, input_dim=16, hidden_dim=32, output_dim=16)    # BN path
    _run_case(k_b, batch=1, input_dim=16, hidden_dim=32, output_dim=16)    # no-BN path
    # Slightly larger case that actually exercises the (Dout-parallel, H-reduction) grid.
    _run_case(k_c, batch=16, input_dim=256, hidden_dim=384, output_dim=256)

    # TODO(synk): BatchNorm1d running_mean/var buffer updates (training-mode side
    # effect) are not reproduced; they do not affect this forward's output.
    print("KERNEL_OK")
</pallas_src>

<mosaic_0001>
module attributes {stable_mosaic.version = 11 : i64} {
  func.func @_mlp_kernel(%arg0: i32, %arg1: i32, %arg2: memref<8x128xbf16, #tpu.memory_space<vmem>>, %arg3: memref<128x128xbf16, #tpu.memory_space<vmem>>, %arg4: memref<128x128xbf16, #tpu.memory_space<vmem>>, %arg5: memref<1x128xf32, #tpu.memory_space<vmem>>, %arg6: memref<1x128xf32, #tpu.memory_space<vmem>>, %arg7: memref<8x128xf32, #tpu.memory_space<vmem>>, %arg8: memref<8x128xf32, #tpu.memory_space<vmem>>) attributes {dimension_semantics = [#tpu.dimension_semantics<parallel>, #tpu.dimension_semantics<arbitrary>], iteration_bounds = array<i64: 1, 1>, scalar_prefetch = 0 : i64, scratch_operands = 1 : i64, tpu.core_type = #tpu.core_type<tc>, window_params = [{pipeline_mode = #tpu.pipeline_mode<synchronous>, transform_indices = @transform_0, window_bounds = array<i64: 8, 128>}, {transform_indices = @transform_1, window_bounds = array<i64: 128, 128>}, {transform_indices = @transform_2, window_bounds = array<i64: 128, 128>}, {transform_indices = @transform_3, window_bounds = array<i64: 1, 128>}, {transform_indices = @transform_4, window_bounds = array<i64: 1, 128>}, {transform_indices = @transform_5, window_bounds = array<i64: 8, 128>}]} {
    %c0_i32 = arith.constant 0 : i32
    %0 = arith.cmpi eq, %arg1, %c0_i32 : i32
    %1 = arith.extui %0 : i1 to i32
    %c0_i32_0 = arith.constant 0 : i32
    %2 = arith.cmpi ne, %1, %c0_i32_0 : i32
    scf.if %2 {
      %cst_24 = arith.constant 0.000000e+00 : f32
      %43 = vector.broadcast %cst_24 : f32 to vector<8x128xf32>
      %c0_25 = arith.constant 0 : index
      %c0_26 = arith.constant 0 : index
      %44 = vector.load %arg8[%c0_25, %c0_26] : memref<8x128xf32, #tpu.memory_space<vmem>>, vector<8x128xf32>
      tpu.vector_store %arg8[%c0_25, %c0_26], %43 {strides = array<i32>} : memref<8x128xf32, #tpu.memory_space<vmem>>, vector<8x128xf32>,
    } else {
    }
    %c0 = arith.constant 0 : index
    %c0_1 = arith.constant 0 : index
    %3 = vector.load %arg2[%c0, %c0_1] : memref<8x128xbf16, #tpu.memory_space<vmem>>, vector<8x128xbf16>
    %c0_2 = arith.constant 0 : index
    %c0_3 = arith.constant 0 : index
    %4 = vector.load %arg3[%c0_2, %c0_3] : memref<128x128xbf16, #tpu.memory_space<vmem>>, vector<128x128xbf16>
    %cst = arith.constant dense<0.000000e+00> : vector<8x128xf32>
    %5 = tpu.matmul %3, %4, %cst {dimension_numbers = #tpu.dot_dimension_numbers<[1], [0], [0], [1], [0, 0, 1, 1], [], []>} : vector<8x128xbf16>, vector<128x128xbf16>, vector<8x128xf32> -> vector<8x128xf32>
    %cst_4 = arith.constant dense<0.000000e+00> : vector<128xf32>
    %6 = vector.multi_reduction <add>, %5, %cst_4 [0] : vector<8x128xf32> to vector<128xf32>
    %7 = vector.shape_cast %6 : vector<128xf32> to vector<1x128xf32>
    %8 = arith.mulf %5, %5 : vector<8x128xf32>
    %cst_5 = arith.constant dense<0.000000e+00> : vector<128xf32>
    %9 = vector.multi_reduction <add>, %8, %cst_5 [0] : vector<8x128xf32> to vector<128xf32>
    %10 = vector.shape_cast %9 : vector<128xf32> to vector<1x128xf32>
    %cst_6 = arith.constant 1.250000e-01 : f32
    %11 = vector.broadcast %cst_6 : f32 to vector<1x128xf32>
    %12 = arith.mulf %7, %11 : vector<1x128xf32>
    %cst_7 = arith.constant 1.250000e-01 : f32
    %13 = vector.broadcast %cst_7 : f32 to vector<1x128xf32>
    %14 = arith.mulf %10, %13 : vector<1x128xf32>
    %15 = arith.mulf %12, %12 : vector<1x128xf32>
    %16 = arith.subf %14, %15 : vector<1x128xf32>
    %cst_8 = arith.constant 0.000000e+00 : f32
    %17 = vector.broadcast %cst_8 : f32 to vector<1x128xf32>
    %18 = arith.maximumf %16, %17 : vector<1x128xf32>
    %19 = vector.broadcast %12 : vector<1x128xf32> to vector<8x128xf32>
    %20 = arith.subf %5, %19 : vector<8x128xf32>
    %cst_9 = arith.constant 9.99999974E-6 : f32
    %21 = vector.broadcast %cst_9 : f32 to vector<1x128xf32>
    %22 = arith.addf %18, %21 : vector<1x128xf32>
    %23 = math.rsqrt %22 : vector<1x128xf32>
    %24 = vector.broadcast %23 : vector<1x128xf32> to vector<8x128xf32>
    %25 = arith.mulf %20, %24 : vector<8x128xf32>
    %c0_10 = arith.constant 0 : index
    %c0_11 = arith.constant 0 : index
    %26 = vector.load %arg5[%c0_10, %c0_11] : memref<1x128xf32, #tpu.memory_space<vmem>>, vector<1x128xf32>
    %27 = vector.broadcast %26 : vector<1x128xf32> to vector<8x128xf32>
    %28 = arith.mulf %25, %27 : vector<8x128xf32>
    %c0_12 = arith.constant 0 : index
    %c0_13 = arith.constant 0 : index
    %29 = vector.load %arg6[%c0_12, %c0_13] : memref<1x128xf32, #tpu.memory_space<vmem>>, vector<1x128xf32>
    %30 = vector.broadcast %29 : vector<1x128xf32> to vector<8x128xf32>
    %31 = arith.addf %28, %30 : vector<8x128xf32>
    %cst_14 = arith.constant 0.000000e+00 : f32
    %32 = vector.broadcast %cst_14 : f32 to vector<8x128xf32>
    %33 = arith.maximumf %31, %32 : vector<8x128xf32>
    %c0_15 = arith.constant 0 : index
    %c0_16 = arith.constant 0 : index
    %34 = vector.load %arg8[%c0_15, %c0_16] : memref<8x128xf32, #tpu.memory_space<vmem>>, vector<8x128xf32>
    %35 = arith.truncf %33 : vector<8x128xf32> to vector<8x128xbf16>
    %c0_17 = arith.constant 0 : index
    %c0_18 = arith.constant 0 : index
    %36 = vector.load %arg4[%c0_17, %c0_18] : memref<128x128xbf16, #tpu.memory_space<vmem>>, vector<128x128xbf16>
    %cst_19 = arith.constant dense<0.000000e+00> : vector<8x128xf32>
    %37 = tpu.matmul %35, %36, %cst_19 {dimension_numbers = #tpu.dot_dimension_numbers<[1], [0], [0], [1], [0, 0, 1, 1], [], []>} : vector<8x128xbf16>, vector<128x128xbf16>, vector<8x128xf32> -> vector<8x128xf32>
    %38 = arith.addf %34, %37 : vector<8x128xf32>
    %c0_20 = arith.constant 0 : index
    %c0_21 = arith.constant 0 : index
    %39 = vector.load %arg8[%c0_20, %c0_21] : memref<8x128xf32, #tpu.memory_space<vmem>>, vector<8x128xf32>
    tpu.vector_store %arg8[%c0_20, %c0_21], %38 {strides = array<i32>} : memref<8x128xf32, #tpu.memory_space<vmem>>, vector<8x128xf32>,
    %c0_i32_22 = arith.constant 0 : i32
    %40 = arith.cmpi eq, %arg1, %c0_i32_22 : i32
    %41 = arith.extui %40 : i1 to i32
    %c0_i32_23 = arith.constant 0 : i32
    %42 = arith.cmpi ne, %41, %c0_i32_23 : i32
    scf.if %42 {
      %c0_24 = arith.constant 0 : index
      %c0_25 = arith.constant 0 : index
      %43 = vector.load %arg8[%c0_24, %c0_25] : memref<8x128xf32, #tpu.memory_space<vmem>>, vector<8x128xf32>
      %c0_26 = arith.constant 0 : index
      %c0_27 = arith.constant 0 : index
      %44 = vector.load %arg7[%c0_26, %c0_27] : memref<8x128xf32, #tpu.memory_space<vmem>>, vector<8x128xf32>
      tpu.vector_store %arg7[%c0_26, %c0_27], %43 {strides = array<i32>} : memref<8x128xf32, #tpu.memory_space<vmem>>, vector<8x128xf32>,
    } else {
    }
    return
  }
  func.func @transform_0(%arg0: i32, %arg1: i32) -> (i32, i32) {
    %c0_i32 = arith.constant 0 : i32
    %c0_i32_0 = arith.constant 0 : i32
    %c0_i32_1 = arith.constant 0 : i32
    return %c0_i32, %c0_i32_0 : i32, i32
  }
  func.func @transform_1(%arg0: i32, %arg1: i32) -> (i32, i32) {
    %c0_i32 = arith.constant 0 : i32
    %c0_i32_0 = arith.constant 0 : i32
    return %c0_i32, %arg1 : i32, i32
  }
  func.func @transform_2(%arg0: i32, %arg1: i32) -> (i32, i32) {
    %c0_i32 = arith.constant 0 : i32
    return %arg1, %arg0 : i32, i32
  }
  func.func @transform_3(%arg0: i32, %arg1: i32) -> (i32, i32) {
    %c0_i32 = arith.constant 0 : i32
    %c0_i32_0 = arith.constant 0 : i32
    return %c0_i32, %arg1 : i32, i32
  }
  func.func @transform_4(%arg0: i32, %arg1: i32) -> (i32, i32) {
    %c0_i32 = arith.constant 0 : i32
    %c0_i32_0 = arith.constant 0 : i32
    return %c0_i32, %arg1 : i32, i32
  }
  func.func @transform_5(%arg0: i32, %arg1: i32) -> (i32, i32) {
    %c0_i32 = arith.constant 0 : i32
    %c0_i32_0 = arith.constant 0 : i32
    return %c0_i32, %arg0 : i32, i32
  }
}

</mosaic_0001>

<llo_original>
// kernel: tpu_custom_call.1
$region0: #{tpu_custom_call.1}
  #allocation0 [shape = 'u32[]', space=smem, size = 0x4, offset = 0x4, fixed_abs, tag = 'smem constant byte address 0x4 - core index']
  #allocation1 [shape = 'u32[72,128]{1,0:T(1,128)}', space=vmem, size = 0x9000, scoped, tag = 'internal scratch']
  #allocation2 [shape = 'f32[8,128]{1,0:T(8,128)}', space=vmem, size = 0x1000, scoped, tag = 'scratch operand']
  %s0 = inlined_call_operand.hbm [shape: bf16[8,128], index: 0, kind: input, shape index: {}]
  %s1 = inlined_call_operand.hbm [shape: bf16[128,128], index: 1, kind: input, shape index: {}]
  %s2 = inlined_call_operand.hbm [shape: bf16[128,128], index: 2, kind: input, shape index: {}]
  %s3 = inlined_call_operand.vmem [shape: f32[1,128], index: 3, kind: input, shape index: {}]
  %s4 = inlined_call_operand.vmem [shape: f32[1,128], index: 4, kind: input, shape index: {}]
  %s5 = inlined_call_operand.hbm [shape: f32[8,128], index: 5, kind: output, shape index: {}]
  %s6 = sld [smem:[#allocation0]]
  $region50: #{tpu_custom_call.1} parent=0
    _
  %s8 = ssub.s32 1, %s6
  %s9 = scalar_select 0, %s8, %s6
  $region1: #{tpu_custom_call.1} parent=0
    #allocation3 [shape = 'u8[2048]{0}', space=vmem, size = 0x800, scoped, tag = 'input window, operand 0, single buffered']
    #allocation4 [shape = 's32[1]{0}', space=sflag, size = 0x4, scoped, tag = 'scoped memory for tpu_custom_call.1']
    #allocation5 [shape = 's32[1]{0}', space=sflag, size = 0x4, scoped, tag = 'scoped memory for tpu_custom_call.1']
    #allocation6 [shape = 'u8[32768]{0}', space=vmem, size = 0x8000, scoped, tag = 'input window, operand 1, single buffered']
    #allocation7 [shape = 's32[1]{0}', space=sflag, size = 0x4, scoped, tag = 'scoped memory for tpu_custom_call.1']
    #allocation8 [shape = 'u8[32768]{0}', space=vmem, size = 0x8000, scoped, tag = 'input window, operand 2, single buffered']
    #allocation9 [shape = 'u8[4096]{0}', space=vmem, size = 0x1000, scoped, tag = 'output window, operand 0, single buffered']
    %10 = vsyncpa [#allocation4], 0
    %11 = vsyncpa [#allocation7], 0
    %12 = vsyncpa [#allocation5], 0
    // Predicated region
    $region2: #{tpu_custom_call.1} parent=1 // pred_check
      _
    $region3: #{tpu_custom_call.1} parent=1 // pred_check_branch
      %14 = sbr.rel (0) target = $region5
    $region4: #{tpu_custom_call.1} parent=1 // pred_region
      %16 = vsyncadd [#allocation4], 0
      %s18 = sshll.u32 %s0, 4
      %s19 = int_to_ptr.hbm [resolvable:$true] %s18
      %s20 = sshll.u32 [#allocation3], 4
      %s21 = int_to_ptr.vmem [resolvable:$true] %s20
      %23 = dma.hbm_to_vmem [thread:$0]  %s19, 64, %s21, [#allocation4]
    $region5: #{tpu_custom_call.1} parent=1 // pred_fallthru
      _
    // Predicated region
    $region6: #{tpu_custom_call.1} parent=1 // pred_check
      _
    $region7: #{tpu_custom_call.1} parent=1 // pred_check_branch
      %25 = sbr.rel (0) target = $region9
    $region8: #{tpu_custom_call.1} parent=1 // pred_region
      %27 = vsyncadd [#allocation7], 0
      %s28 = sshll.u32 %s1, 4
      %s29 = int_to_ptr.hbm [resolvable:$true] %s28
      %s30 = sshll.u32 [#allocation6], 4
      %s31 = int_to_ptr.vmem [resolvable:$true] %s30
      %36 = dma.hbm_to_vmem [thread:$0]  %s29, 1024, %s31, [#allocation7], 64, 64, 4
    $region9: #{tpu_custom_call.1} parent=1 // pred_fallthru
      _
    // Predicated region
    $region10: #{tpu_custom_call.1} parent=1 // pred_check
      _
    $region11: #{tpu_custom_call.1} parent=1 // pred_check_branch
      %38 = sbr.rel (0) target = $region13
    $region12: #{tpu_custom_call.1} parent=1 // pred_region
      %40 = vsyncadd [#allocation7], 0
      %s41 = sshll.u32 %s2, 4
      %s42 = int_to_ptr.hbm [resolvable:$true] %s41
      %s43 = sshll.u32 [#allocation8], 4
      %s44 = int_to_ptr.vmem [resolvable:$true] %s43
      %49 = dma.hbm_to_vmem [thread:$0]  %s42, 1024, %s44, [#allocation7], 64, 64, 4
    $region13: #{tpu_custom_call.1} parent=1 // pred_fallthru
      _
    // Predicated region
    $region14: #{tpu_custom_call.1} parent=1 // pred_check
      _
    $region15: #{tpu_custom_call.1} parent=1 // pred_check_branch
      %51 = sbr.rel (0) target = $region17
    $region16: #{tpu_custom_call.1} parent=1 // pred_region
      _
    $region17: #{tpu_custom_call.1} parent=1 // pred_fallthru
      _
    // Predicated region
    $region18: #{tpu_custom_call.1} parent=1 // pred_check
      _
    $region19: #{tpu_custom_call.1} parent=1 // pred_check_branch
      %53 = sbr.rel (0) target = $region21
    $region20: #{tpu_custom_call.1} parent=1 // pred_region
      _
    $region21: #{tpu_custom_call.1} parent=1 // pred_fallthru
      _
    // Predicated region
    $region22: #{tpu_custom_call.1} parent=1 // pred_check
      _
    $region23: #{tpu_custom_call.1} parent=1 // pred_check_branch
      %55 = sbr.rel (0) target = $region25
    $region24: #{tpu_custom_call.1} parent=1 // pred_region
      %57 = dma.done [#allocation4], 64
    $region25: #{tpu_custom_call.1} parent=1 // pred_fallthru
      _
    // Predicated region
    $region26: #{tpu_custom_call.1} parent=1 // pred_check
      _
    $region27: #{tpu_custom_call.1} parent=1 // pred_check_branch
      %59 = sbr.rel (0) target = $region29
    $region28: #{tpu_custom_call.1} parent=1 // pred_region
      %61 = dma.done [#allocation7], 1024
    $region29: #{tpu_custom_call.1} parent=1 // pred_fallthru
      _
    // Predicated region
    $region30: #{tpu_custom_call.1} parent=1 // pred_check
      _
    $region31: #{tpu_custom_call.1} parent=1 // pred_check_branch
      %63 = sbr.rel (0) target = $region33
    $region32: #{tpu_custom_call.1} parent=1 // pred_region
      %65 = dma.done [#allocation7], 1024
    $region33: #{tpu_custom_call.1} parent=1 // pred_fallthru
      _
    %p66 = scmp.eq.s32.totalorder 0, 0
    // Predicated region
    $region34: #{tpu_custom_call.1} parent=1 // pred_check
      %p67 = pneg %p66
    $region35: #{tpu_custom_call.1} parent=1 // pred_check_branch
      %69 = sbr.rel (%p67) target = $region37
    $region36: #{tpu_custom_call.1} parent=1 // pred_region
      %70 = vst [vmem:[#allocation2] sm:$0xff] 0.0
    $region37: #{tpu_custom_call.1} parent=1 // pred_fallthru
      _
    %v71 = vld [vmem:[#allocation3] sm:$0xf]
    %v72 = vld [vmem:[#allocation6] sm:$0xf]
    %v73 = vld [vmem:[#allocation6 + $0x4] sm:$0xf]
    %v74 = vld [vmem:[#allocation6 + $0x8] sm:$0xf]
    %v75 = vld [vmem:[#allocation6 + $0xc] sm:$0xf]
    %v76 = vld [vmem:[#allocation6 + $0x10] sm:$0xf]
    %v77 = vld [vmem:[#allocation6 + $0x14] sm:$0xf]
    %v78 = vld [vmem:[#allocation6 + $0x18] sm:$0xf]
    %v79 = vld [vmem:[#allocation6 + $0x1c] sm:$0xf]
    %v80 = vld [vmem:[#allocation6 + $0x20] sm:$0xf]
    %v81 = vld [vmem:[#allocation6 + $0x24] sm:$0xf]
    %v82 = vld [vmem:[#allocation6 + $0x28] sm:$0xf]
    %v83 = vld [vmem:[#allocation6 + $0x2c] sm:$0xf]
    %v84 = vld [vmem:[#allocation6 + $0x30] sm:$0xf]
    %v85 = vld [vmem:[#allocation6 + $0x34] sm:$0xf]
    %v86 = vld [vmem:[#allocation6 + $0x38] sm:$0xf]
    %v87 = vld [vmem:[#allocation6 + $0x3c] sm:$0xf]
    %v104 = vunpack.c.l.b16 %v72
    %v105 = vunpack.c.l.b16 %v73
    %v106 = vunpack.c.l.b16 %v74
    %v107 = vunpack.c.l.b16 %v75
    %v108 = vunpack.c.l.b16 %v76
    %v109 = vunpack.c.l.b16 %v77
    %v110 = vunpack.c.l.b16 %v78
    %v111 = vunpack.c.l.b16 %v79
    %v112 = vunpack.c.l.b16 %v80
    %v113 = vunpack.c.l.b16 %v81
    %v114 = vunpack.c.l.b16 %v82
    %v115 = vunpack.c.l.b16 %v83
    %v116 = vunpack.c.l.b16 %v84
    %v117 = vunpack.c.l.b16 %v85
    %v118 = vunpack.c.l.b16 %v86
    %v119 = vunpack.c.l.b16 %v87
    %v120 = vpack.c.b16 %v105, %v104
    %v121 = vpack.c.b16 %v107, %v106
    %v122 = vpack.c.b16 %v109, %v108
    %v123 = vpack.c.b16 %v111, %v110
    %v124 = vpack.c.b16 %v113, %v112
    %v125 = vpack.c.b16 %v115, %v114
    %v126 = vpack.c.b16 %v117, %v116
    %v127 = vpack.c.b16 %v119, %v118
    %136 = vmatpush.bf16.msra.mxu0 %v127
    %137 = vmatpush.bf16.msra.mxu0 %v126
    %138 = vmatpush.bf16.msra.mxu0 %v125
    %139 = vmatpush.bf16.msra.mxu0 %v124
    %140 = vmatpush.bf16.msra.mxu0 %v123
    %141 = vmatpush.bf16.msra.mxu0 %v122
    %142 = vmatpush.bf16.msra.mxu0 %v121
    %143 = vmatpush.bf16.msra.mxu0 %v120
    %144 = vmatmul.bf16.gmra.mxu0 %v71
    %v145 = vpop.f32.mrf.mxu0
    %v146 = vadd.f32 0.0, %v145
    %v147 = vpop.f32.mrf.mxu0
    %148 = vdwg.mxu0
    %v149 = vrot.slane %v146, 4
    %v150 = vadd.f32 %v146, %v149
    %v151 = vrot.slane %v150, 2
    %v152 = vadd.f32 %v150, %v151
    %v153 = vrot.slane %v152, 1
    %v154 = vadd.f32 %v152, %v153
    %v155 = vmul.f32 %v146, %v146
    %v156 = vrot.slane %v155, 4
    %v157 = vadd.f32 %v155, %v156
    %v158 = vrot.slane %v157, 2
    %v159 = vadd.f32 %v157, %v158
    %v160 = vrot.slane %v159, 1
    %v161 = vadd.f32 %v159, %v160
    %v162 = vmul.f32 %v154, 0.125
    %v163 = vmul.f32 %v161, 0.125
    %v164 = vmul.f32 %v162, %v162
    %v165 = vsub.f32 %v163, %v164
    %v166 = vmax.f32 %v165, 0.0
    %v167 = vsub.f32 %v146, %v162
    %v168 = vadd.f32 %v166, 1e-05
    %v169 = vrsqrt.pop %v168
    %v170 = vmul.f32 %v169, %v168
    %v171 = vmul.f32 %v170, %v169
    %v172 = vmul.f32 0.5, %v171
    %v173 = vsub.f32 1.5, %v172
    %v174 = vmul.f32 %v169, %v173
    %vm175 = vweird.f32 %v168
    %vm176 = vweird.f32 %v169
    %vm177 = vmor %vm175, %vm176
    %v178 = vsel %vm177, %v169, %v174
    %v179 = vmul.f32 %v167, %v178
    %v180 = vld [vmem:[%s3] sm:$0x1]
    %v182 = vperm.slane %v180, 0
    %v184 = vmul.f32 %v179, %v182
    %v185 = vld [vmem:[%s4] sm:$0x1]
    %v187 = vperm.slane %v185, 0
    %v189 = vadd.f32 %v184, %v187
    %v190 = vmax.f32 %v189, 0.0
    %v191 = vld [vmem:[#allocation2] sm:$0xff]
    %v192 = vpack.c.bf16 %v190, %v190
    %v193 = vld [vmem:[#allocation8] sm:$0xf]
    %v194 = vld [vmem:[#allocation8 + $0x4] sm:$0xf]
    %v195 = vld [vmem:[#allocation8 + $0x8] sm:$0xf]
    %v196 = vld [vmem:[#allocation8 + $0xc] sm:$0xf]
    %v197 = vld [vmem:[#allocation8 + $0x10] sm:$0xf]
    %v198 = vld [vmem:[#allocation8 + $0x14] sm:$0xf]
    %v199 = vld [vmem:[#allocation8 + $0x18] sm:$0xf]
    %v200 = vld [vmem:[#allocation8 + $0x1c] sm:$0xf]
    %v201 = vld [vmem:[#allocation8 + $0x20] sm:$0xf]
    %v202 = vld [vmem:[#allocation8 + $0x24] sm:$0xf]
    %v203 = vld [vmem:[#allocation8 + $0x28] sm:$0xf]
    %v204 = vld [vmem:[#allocation8 + $0x2c] sm:$0xf]
    %v205 = vld [vmem:[#allocation8 + $0x30] sm:$0xf]
    %v206 = vld [vmem:[#allocation8 + $0x34] sm:$0xf]
    %v207 = vld [vmem:[#allocation8 + $0x38] sm:$0xf]
    %v208 = vld [vmem:[#allocation8 + $0x3c] sm:$0xf]
    %v225 = vunpack.c.l.b16 %v193
    %v226 = vunpack.c.l.b16 %v194
    %v227 = vunpack.c.l.b16 %v195
    %v228 = vunpack.c.l.b16 %v196
    %v229 = vunpack.c.l.b16 %v197
    %v230 = vunpack.c.l.b16 %v198
    %v231 = vunpack.c.l.b16 %v199
    %v232 = vunpack.c.l.b16 %v200
    %v233 = vunpack.c.l.b16 %v201
    %v234 = vunpack.c.l.b16 %v202
    %v235 = vunpack.c.l.b16 %v203
    %v236 = vunpack.c.l.b16 %v204
    %v237 = vunpack.c.l.b16 %v205
    %v238 = vunpack.c.l.b16 %v206
    %v239 = vunpack.c.l.b16 %v207
    %v240 = vunpack.c.l.b16 %v208
    %v241 = vpack.c.b16 %v226, %v225
    %v242 = vpack.c.b16 %v228, %v227
    %v243 = vpack.c.b16 %v230, %v229
    %v244 = vpack.c.b16 %v232, %v231
    %v245 = vpack.c.b16 %v234, %v233
    %v246 = vpack.c.b16 %v236, %v235
    %v247 = vpack.c.b16 %v238, %v237
    %v248 = vpack.c.b16 %v240, %v239
    %257 = vmatpush.bf16.msra.mxu0 %v248
    %258 = vmatpush.bf16.msra.mxu0 %v247
    %259 = vmatpush.bf16.msra.mxu0 %v246
    %260 = vmatpush.bf16.msra.mxu0 %v245
    %261 = vmatpush.bf16.msra.mxu0 %v244
    %262 = vmatpush.bf16.msra.mxu0 %v243
    %263 = vmatpush.bf16.msra.mxu0 %v242
    %264 = vmatpush.bf16.msra.mxu0 %v241
    %265 = vmatmul.bf16.gmra.mxu0 %v192
    %v266 = vpop.f32.mrf.mxu0
    %v267 = vadd.f32 0.0, %v266
    %v268 = vpop.f32.mrf.mxu0
    %269 = vdwg.mxu0
    %v270 = vadd.f32 %v191, %v267
    %271 = vst [vmem:[#allocation2] sm:$0xff] %v270
    // Predicated region
    $region38: #{tpu_custom_call.1} parent=1 // pred_check
      %p272 = pneg %p66
    $region39: #{tpu_custom_call.1} parent=1 // pred_check_branch
      %274 = sbr.rel (%p272) target = $region41
    $region40: #{tpu_custom_call.1} parent=1 // pred_region
      %v275 = vld [vmem:[#allocation2] sm:$0xff]
      %276 = vst [vmem:[#allocation9] sm:$0xff] %v275
    $region41: #{tpu_custom_call.1} parent=1 // pred_fallthru
      _
    // Predicated region
    $region42: #{tpu_custom_call.1} parent=1 // pred_check
      _
    $region43: #{tpu_custom_call.1} parent=1 // pred_check_branch
      %278 = sbr.rel (0) target = $region45
    $region44: #{tpu_custom_call.1} parent=1 // pred_region
      %280 = vsyncadd [#allocation5], 0
      %s282 = sshll.u32 [#allocation9], 4
      %s283 = int_to_ptr.vmem [resolvable:$true] %s282
      %s284 = sshll.u32 %s5, 4
      %s285 = int_to_ptr.hbm [resolvable:$true] %s284
      %287 = dma.vmem_to_hbm [thread:$0]  %s283, 128, %s285, [#allocation5]
    $region45: #{tpu_custom_call.1} parent=1 // pred_fallthru
      _
    // Predicated region
    $region46: #{tpu_custom_call.1} parent=1 // pred_check
      _
    $region47: #{tpu_custom_call.1} parent=1 // pred_check_branch
      %289 = sbr.rel (0) target = $region49
    $region48: #{tpu_custom_call.1} parent=1 // pred_region
      %291 = dma.done [#allocation5], 128
    $region49: #{tpu_custom_call.1} parent=1 // pred_fallthru
      _
    %292 = vsyncpa [#allocation4], 1
    %293 = vsyncpa [#allocation7], 1
    %294 = vsyncpa [#allocation5], 1

</llo_original>
